<compile_context>
chip_gen: v6e
topology: v6e:2x2x1
jax: 0.10.0
libtpu: 0.0.40
codegen_flags: <defaults>
</compile_context>

<pallas_src>
import functools

import jax
import jax.numpy as jnp
from jax.experimental import pallas as pl
from jax.experimental.pallas import tpu as pltpu


LANE = 128            # TPU lane width; every matmul operand/output is lane-dense.
HEAD_BNECK = 11       # head columns [0:11)  -> bottleneck (pose / intrinsics)
HEAD_MASK = 4         # head columns [11:15) -> per-token 4-channel mask logits
MASK_COL0 = 8         # transposed mask head covers head columns [8:16) ...
MASK_ROWS = 8         # ... emitted as 8 lane-major rows; mask channels = rows 3..6
BIAS_ROWS = 16        # packed bias slab rows
BIAS_MASKT_ROW0 = 8   # bias-slab rows holding the mask-T bias column


def _pick_tm_cap():
    """Token-tile cap per TPU generation (perf review: 2048 on v5e — 16 MiB
    default scoped VMEM / narrower MXU; 4096 on v6e/v7x)."""
    try:
        kind = jax.devices()[0].device_kind.lower()
    except Exception:
        return 4096
    if "v5 lite" in kind or "v5e" in kind or "v5lite" in kind:
        return 2048
    return 4096


# ----------------------------------------------------------------------------
# Fused backbone Pallas kernel (one token tile per grid step).
# ----------------------------------------------------------------------------
def _fused_backbone_kernel(tok_ref, w_ref, b_ref, mask_ref, bneck_ref, *,
                           kp, t_tok, b_per_tile, inv_t):
    """Process one token tile (tm = b_per_tile * t_tok rows).

    tok_ref   : (tm, kp)              bf16 patch tokens (whole batches only).
    w_ref     : (kp + 2*128 + 8, 128) bf16 packed weights
                [w_embed | w_hidden | w_heads | w_heads[:, 8:16].T].
    b_ref     : (16, 128)             f32 packed biases (rows 0..2) and the
                mask-T bias column (rows 8..15).
    mask_ref  : (8, tm)               bf16 transposed head cols 8..15 (lane-dense).
    bneck_ref : (1, b_per_tile, 128)  f32 exact per-batch pooled head rows.
    """
    x = tok_ref[...]                                              # (tm, kp) bf16
    w_embed = w_ref[0:kp, :]                                      # (kp, 128)
    w_hidden = w_ref[kp:kp + LANE, :]                             # (128, 128)
    w_heads = w_ref[kp + LANE:kp + 2 * LANE, :]                   # (128, 128)
    w_mask_t = w_ref[kp + 2 * LANE:kp + 2 * LANE + MASK_ROWS, :]  # (8, 128)

    h1 = jnp.dot(x, w_embed, preferred_element_type=jnp.float32)
    h1 = jnp.maximum(h1 + b_ref[0:1, :], 0.0)                     # (tm, 128) f32
    h2 = jnp.dot(h1.astype(jnp.bfloat16), w_hidden,
                 preferred_element_type=jnp.float32)
    h2 = jnp.maximum(h2 + b_ref[1:2, :], 0.0)                     # (tm, 128) f32
    h2_bf = h2.astype(jnp.bfloat16)

    # Transposed mask-logit head: mask_t[r, m] = sum_d h2[m,d] * w_heads[d, 8+r].
    # Contracting both minor dims keeps tokens on the lane axis -> unmasked,
    # lane-dense stores of a tiny (8, tm) bf16 slab (full head never written).
    mask_t = jnp.einsum('rd,md->rm', w_mask_t, h2_bf,
                        preferred_element_type=jnp.float32)        # (8, tm)
    mask_t = mask_t + b_ref[BIAS_MASKT_ROW0:BIAS_MASKT_ROW0 + MASK_ROWS, 0:1]
    mask_ref[...] = mask_t.astype(jnp.bfloat16)

    # Per-batch token-mean bottleneck.  The head is affine in h2, so
    # mean_T(h2 @ W + b) == mean_T(h2) @ W + b.  Each tile covers whole
    # batches (tm % T == 0), so these rows are exact (not partial sums) and
    # every grid step writes its own disjoint bneck block (parallel-safe).
    parts = []
    for bi in range(b_per_tile):                # small static loop (<= images/tile)
        seg = h2[bi * t_tok:(bi + 1) * t_tok, :]
        parts.append(jnp.sum(seg, axis=0, keepdims=True))          # (1, 128)
    pooled = parts[0] if b_per_tile == 1 else jnp.concatenate(parts, axis=0)
    pooled = (pooled * inv_t).astype(jnp.bfloat16)                 # (b_per_tile, 128)
    bneck = jnp.dot(pooled, w_heads,
                    preferred_element_type=jnp.float32) + b_ref[2:3, :]
    bneck_ref[...] = bneck.reshape(1, b_per_tile, LANE)


def fused_backbone(tokens_bf16, params, *, t_tok, tm_cap=None):
    """Tiled pallas_call for the whole token pipeline.

    tokens_bf16: (M, kp) bf16 patch tokens, M = n_images * t_tok.
    Returns (mask_t (8, M) bf16, bneck_parts (num_tiles, b_per_tile, 128) f32).
    """
    M, kp = tokens_bf16.shape
    n_img = M // t_tok
    assert n_img * t_tok == M
    w_slab = params["w_slab"]
    b_slab = params["b_slab"]
    w_rows = w_slab.shape[0]
    assert w_rows == kp + 2 * LANE + MASK_ROWS

    if tm_cap is None:
        tm_cap = _pick_tm_cap()
    # Tile over whole images only, so no cross-step accumulation is needed and
    # the token axis can be "parallel" (v7x 2-TC safe).
    # TODO(synk): if a single image's T ever exceeds tm_cap (huge img_hw /
    # tiny patch), add an inner "arbitrary" sub-image axis with a VMEM
    # accumulator instead of growing the tile.
    k = max(1, min(n_img, tm_cap // max(t_tok, 1)))
    while n_img % k:
        k -= 1
    b_per_tile = k
    tm = b_per_tile * t_tok
    num_tiles = M // tm

    # Explicit VMEM budget (perf review): ~10 MiB at prod tile sizes, well
    # under v7x's 32 MiB scoped / 64 MiB physical VMEM.
    work = (2 * tm * kp * 2                                    # token tile (x2 buf)
            + 2 * (w_rows * LANE * 2 + BIAS_ROWS * LANE * 4)   # resident weights
            + 4 * tm * LANE * 4                                # f32 intermediates
            + 2 * MASK_ROWS * tm * 2                           # mask tile out
            + 2 * b_per_tile * LANE * 4)                       # bneck tile out
    vmem_limit = int(min(max(2 * work, 8 << 20), 32 << 20))

    flops = 2 * M * LANE * (kp + LANE + MASK_ROWS) + 2 * n_img * LANE * LANE
    bytes_accessed = (M * kp * 2 + w_rows * LANE * 2 + BIAS_ROWS * LANE * 4
                      + MASK_ROWS * M * 2 + num_tiles * b_per_tile * LANE * 4)

    kernel = functools.partial(
        _fused_backbone_kernel, kp=kp, t_tok=t_tok,
        b_per_tile=b_per_tile, inv_t=1.0 / float(t_tok))

    mask_t, bneck_parts = pl.pallas_call(
        kernel,
        out_shape=(jax.ShapeDtypeStruct((MASK_ROWS, M), jnp.bfloat16),
                   jax.ShapeDtypeStruct((num_tiles, b_per_tile, LANE),
                                        jnp.float32)),
        grid=(num_tiles,),
        in_specs=[
            pl.BlockSpec((tm, kp), lambda i: (i, 0)),            # tokens (tiled)
            pl.BlockSpec((w_rows, LANE), lambda i: (0, 0)),      # weights (resident)
            pl.BlockSpec((BIAS_ROWS, LANE), lambda i: (0, 0)),   # biases (resident)
        ],
        out_specs=(pl.BlockSpec((MASK_ROWS, tm), lambda i: (0, i)),
                   pl.BlockSpec((1, b_per_tile, LANE), lambda i: (i, 0, 0))),
        compiler_params=pltpu.CompilerParams(
            dimension_semantics=("parallel",),
            vmem_limit_bytes=vmem_limit),
        cost_estimate=pl.CostEstimate(flops=flops, transcendentals=0,
                                      bytes_accessed=bytes_accessed),
    )(tokens_bf16, w_slab, b_slab)
    return mask_t, bneck_parts


# ----------------------------------------------------------------------------
# Synthetic MobileViT-like backbone (TODO(synk): mobilevit_s source was not
# provided; replaced with a deterministic patch-embed + MLP backbone whose hot
# path runs in the fused Pallas kernel and which produces the same output
# signature: bottleneck[B,11] + x3/x2/x1 multiscale 4-channel mask logits).
# ----------------------------------------------------------------------------
def patchify(x, P):
    # x: (B, C, H, W) -> tokens (B, T, C*P*P), token grid (Ht, Wt)
    B, C, H, W = x.shape
    Ht, Wt = H // P, W // P
    x = x.reshape(B, C, Ht, P, Wt, P)
    x = x.transpose(0, 2, 4, 1, 3, 5)          # (B, Ht, Wt, C, P, P)
    return x.reshape(B, Ht * Wt, C * P * P), (Ht, Wt)


def avg_pool2(x):
    B, C, H, W = x.shape
    return x.reshape(B, C, H // 2, 2, W // 2, 2).mean(axis=(3, 5))


def vit_forward(params, t_i, r_i, patch):
    x = jnp.concatenate([t_i, r_i], axis=1)     # (B, 2C, H, W)
    B = x.shape[0]
    tokens, (Ht, Wt) = patchify(x, patch)       # (B, T, pdim)
    T = tokens.shape[1]
    pdim = tokens.shape[2]
    kp = params["w_slab"].shape[0] - 2 * LANE - MASK_ROWS   # static under jit
    tok = tokens.reshape(B * T, pdim)
    if kp > pdim:
        tok = jnp.pad(tok, ((0, 0), (0, kp - pdim)))        # zero pad -> inert
    tok = tok.astype(jnp.bfloat16)
    # TODO(synk): at production size (img_hw=256) move this patchify gather
    # into the kernel (grid over (b, ht, wt) with a BlockSpec pulling (C,P,P)
    # patches straight from NCHW) so the (M, kp) token matrix never hits HBM.
    mask_t, bneck_parts = fused_backbone(tok, params, t_tok=T)

    # Tiles cover whole images in order, so the partials reshape directly to
    # the per-image bottleneck (no wrapper reduction needed).
    bneck = bneck_parts.reshape(B, LANE)
    bottleneck = bneck[:, :HEAD_BNECK]                               # (B, 11)

    r0 = HEAD_BNECK - MASK_COL0                                      # = 3
    mlog_t = mask_t[r0:r0 + HEAD_MASK, :].astype(jnp.float32)        # (4, B*T)
    x1 = mlog_t.reshape(HEAD_MASK, B, Ht, Wt).transpose(1, 0, 2, 3)  # (B,4,Ht,Wt)
    x2 = avg_pool2(x1)
    x3 = avg_pool2(x2)
    return bottleneck, x3, x2, x1


# ----------------------------------------------------------------------------
# Pose math (standard SfMLearner conventions; euler2mat/mat2euler undefined in
# the reference source).
# ----------------------------------------------------------------------------
def euler2mat(angle):
    # angle: (B, 3) = (x, y, z); R = Rx @ Ry @ Rz
    x, y, z = angle[:, 0], angle[:, 1], angle[:, 2]
    cz, sz = jnp.cos(z), jnp.sin(z)
    cy, sy = jnp.cos(y), jnp.sin(y)
    cx, sx = jnp.cos(x), jnp.sin(x)
    zeros = jnp.zeros_like(z)
    ones = jnp.ones_like(z)
    zmat = jnp.stack([cz, -sz, zeros, sz, cz, zeros, zeros, zeros, ones],
                     axis=1).reshape(-1, 3, 3)
    ymat = jnp.stack([cy, zeros, sy, zeros, ones, zeros, -sy, zeros, cy],
                     axis=1).reshape(-1, 3, 3)
    xmat = jnp.stack([ones, zeros, zeros, zeros, cx, -sx, zeros, sx, cx],
                     axis=1).reshape(-1, 3, 3)
    return xmat @ ymat @ zmat


def mat2euler(R):
    # inverse of euler2mat above (R = Rx Ry Rz).
    # TODO(synk): assumes cos(y) > 0 (no gimbal-lock guard); fine for the
    # small rots_scale-clamped angles this network produces.
    sy = jnp.clip(R[:, 0, 2], -1.0, 1.0)
    y = jnp.arcsin(sy)
    x = jnp.arctan2(-R[:, 1, 2], R[:, 2, 2])
    z = jnp.arctan2(-R[:, 0, 1], R[:, 0, 0])
    return jnp.stack([x, y, z], axis=1)


def pair_softmax(x):
    # TODO(synk): gumbel_softmax is undefined in the source and stochastic in
    # torch; implemented as deterministic (noise-free, tau=1) pairwise softmax
    # over channel pairs (0,1)/(2,3), keeping channel 0:
    #   softmax2(a, b)[0] = sigmoid(a - b).
    m0 = jax.nn.sigmoid(x[:, 0:1] - x[:, 1:2])
    m1 = jax.nn.sigmoid(x[:, 2:3] - x[:, 3:4])
    return jnp.concatenate([m0, m1], axis=1)


# ----------------------------------------------------------------------------
# PoseExpNet_WCE forward
# ----------------------------------------------------------------------------
def sub_forward(params, target_image, ref_img, cfg):
    H, W = ref_img.shape[2], ref_img.shape[3]
    assert H == cfg["img_hw"] and W == cfg["img_hw"]
    # input_image_c == 4 -> no rescaling branch
    t_i, r_i = target_image, ref_img
    bottleneck, x3, x2, x1 = vit_forward(params, t_i, r_i, cfg["patch"])

    # learn_pose_scale=True: clamp(min=1e-4)
    rots_scale = jnp.maximum(params["rots_scale"], 1e-4)
    trans_scale = jnp.maximum(params["trans_scale"], 1e-4)

    angles = rots_scale * bottleneck[:, :3]
    rotation = euler2mat(angles)                                   # (B,3,3)
    translation = (trans_scale * bottleneck[:, 3:6])[:, None, :]   # (B,1,3)
    pose_mat = jnp.concatenate([rotation, translation], axis=1)[:, None]  # (B,1,4,3)

    scales = jnp.array([[W, H]], dtype=jnp.float32)                # (1,2)
    focal_lengths = jax.nn.softplus(bottleneck[:, 6:8]) * scales   # (B,2)
    foci = focal_lengths[:, :, None] * jnp.eye(2, dtype=jnp.float32)[None]  # diag_embed

    # TODO(synk): intri_index is an undefined global in the source; using the
    # intri_index is None branch (offsets from bottleneck).
    offsets = jax.nn.sigmoid(bottleneck[:, 8:10]) * scales          # (B,2)
    intrinsic_mat = jnp.concatenate([foci, offsets[:, :, None]], axis=2)  # (B,2,3)

    # default branch (dist_truth=False, is_unitycam=False)
    distort_ratio = jax.nn.sigmoid(bottleneck[:, 10:11])
    maxx = jnp.maximum(intrinsic_mat[:, 0, 2], W - intrinsic_mat[:, 0, 2])
    maxy = jnp.maximum(intrinsic_mat[:, 1, 2], H - intrinsic_mat[:, 1, 2])
    maxx = maxx / intrinsic_mat[:, 0, 0]
    maxy = maxy / intrinsic_mat[:, 1, 1]
    maxrr = maxx * maxx + maxy * maxy
    min_distortion = (-0.7 / maxrr)[:, None]
    distort_coeffs = jax.lax.stop_gradient(min_distortion) * distort_ratio  # (B,1)

    last_row = jnp.broadcast_to(
        jnp.array([[[0.0, 0.0, 1.0]]], dtype=jnp.float32),
        (bottleneck.shape[0], 1, 3))
    intrinsic_mat = jnp.concatenate([intrinsic_mat, last_row], axis=1)  # (B,3,3)

    euler_pose = jax.lax.stop_gradient(mat2euler(rotation))
    pose = jnp.concatenate(
        [jax.lax.stop_gradient(translation), euler_pose[:, None, :]], axis=2)  # (B,1,6)

    exp_mask3 = pair_softmax(x3)
    exp_mask2 = pair_softmax(x2)
    exp_mask1 = pair_softmax(x1)
    return (intrinsic_mat, distort_coeffs, exp_mask1[:, :2], exp_mask2[:, :2],
            exp_mask3[:, :2], pose_mat, pose)


def forward(params, target_image, ref_imgs, cfg):
    b = target_image.shape[0]
    tcat = jnp.concatenate([target_image, ref_imgs[0]], axis=0)
    rcat = jnp.concatenate([ref_imgs[0], target_image], axis=0)
    (intr_f, dist_f, m1_f, m2_f, m3_f, pm_f, p_f) = sub_forward(
        params, tcat, rcat, cfg)
    exp_mask1, exp_mask1t = jnp.split(m1_f, 2, axis=0)
    exp_mask2, exp_mask2t = jnp.split(m2_f, 2, axis=0)
    exp_mask3, exp_mask3t = jnp.split(m3_f, 2, axis=0)
    pose_mat, re_pose_mat = jnp.split(pm_f, 2, axis=0)
    pose, re_pose = jnp.split(p_f, 2, axis=0)
    intrinsic_mat = intr_f.reshape(2, b, 3, 3).mean(axis=0)
    distort_coeffs = dist_f.reshape(2, b, 1).mean(axis=0)
    return ([exp_mask1, exp_mask2, exp_mask3],
            [exp_mask1t, exp_mask2t, exp_mask3t],
            pose, re_pose, pose_mat, re_pose_mat,
            intrinsic_mat, distort_coeffs)


# ----------------------------------------------------------------------------
# Deterministic parameter init.  Weights are stored lane-dense (zero-padded to
# 128 columns/rows) and packed into the two kernel operands: one bf16 weight
# slab [w_embed | w_hidden | w_heads | w_heads[:,8:16].T] and one f32 bias
# slab.  The zero padding is mathematically inert (padded hidden units are
# relu(0)=0 feeding zero weights); keep padded lanes at zero if params are
# ever re-loaded from an unpadded checkpoint.
# ----------------------------------------------------------------------------
def init_params(key, cfg, r_scale=0.01, tl_scale=0.01):
    pdim = 2 * cfg["in_c"] * cfg["patch"] ** 2     # = 128 for this config
    kp = max(LANE, ((pdim + LANE - 1) // LANE) * LANE)   # lane-dense token dim
    D = cfg["dim"]                                  # logical hidden width (32)
    ks = jax.random.split(key, 4)

    def w(k, shape):
        return 0.05 * jax.random.normal(k, shape, jnp.float32)

    def pad_to(a, rows, cols):
        return jnp.pad(a, ((0, rows - a.shape[0]), (0, cols - a.shape[1])))

    w_embed = pad_to(w(ks[0], (pdim, D)), kp, LANE)                # (kp, 128)
    w_hidden = pad_to(w(ks[1], (D, D)), LANE, LANE)                # (128, 128)
    w_heads = pad_to(
        jnp.concatenate([w(ks[2], (D, HEAD_BNECK)),                # bneck cols
                         w(ks[3], (D, HEAD_MASK))], axis=1),       # mask cols
        LANE, LANE)                                                # (128, 128)
    b_embed = jnp.zeros((LANE,), jnp.float32)
    b_hidden = jnp.zeros((LANE,), jnp.float32)
    b_heads = jnp.zeros((LANE,), jnp.float32)

    # Packed operands (perf review: fewer DMA descriptors / BlockSpecs).
    w_mask_t = w_heads[:, MASK_COL0:MASK_COL0 + MASK_ROWS].T       # (8, 128)
    w_slab = jnp.concatenate([w_embed, w_hidden, w_heads, w_mask_t],
                             axis=0).astype(jnp.bfloat16)          # (kp+264, 128)
    b_slab = jnp.zeros((BIAS_ROWS, LANE), jnp.float32)
    b_slab = b_slab.at[0].set(b_embed)
    b_slab = b_slab.at[1].set(b_hidden)
    b_slab = b_slab.at[2].set(b_heads)
    b_slab = b_slab.at[BIAS_MASKT_ROW0:BIAS_MASKT_ROW0 + MASK_ROWS].set(
        jnp.broadcast_to(b_heads[MASK_COL0:MASK_COL0 + MASK_ROWS, None],
                         (MASK_ROWS, LANE)))
    return dict(
        w_slab=w_slab, b_slab=b_slab,
        rots_scale=jnp.array([r_scale], jnp.float32),
        trans_scale=jnp.array([tl_scale], jnp.float32),
    )


if __name__ == "__main__":
    # Small synthetic config consistent with the module (input_image_c=4),
    # scaled down from img_hw=256 to 16 for the test.
    cfg = dict(img_hw=16, patch=4, dim=32, in_c=4)

    key = jax.random.PRNGKey(0)
    kp_, k1, k2 = jax.random.split(key, 3)
    params = init_params(kp_, cfg)

    b, C, H, W = 2, 4, cfg["img_hw"], cfg["img_hw"]
    target_image = jax.random.normal(k1, (b, C, H, W), jnp.float32)
    ref_img = jax.random.normal(k2, (b, C, H, W), jnp.float32)

    fwd = jax.jit(functools.partial(forward, cfg=cfg))
    outs = fwd(params, target_image, [ref_img])
    outs = jax.block_until_ready(outs)

    # quick sanity checks on shapes / values
    masks, maskst, pose, re_pose, pose_mat, re_pose_mat, K, dist = outs
    assert masks[0].shape == (b, 2, 4, 4)
    assert masks[1].shape == (b, 2, 2, 2)
    assert masks[2].shape == (b, 2, 1, 1)
    assert pose.shape == (b, 1, 6)
    assert pose_mat.shape == (b, 1, 4, 3)
    assert K.shape == (b, 3, 3)
    assert dist.shape == (b, 1)
    assert bool(jnp.all(jnp.isfinite(K)))
    assert bool(jnp.all(jnp.isfinite(masks[0])))
    print("KERNEL_OK")
</pallas_src>

<mosaic_0001>
module attributes {stable_mosaic.version = 11 : i64} {
  func.func @_fused_backbone_kernel(%arg0: i32, %arg1: memref<64x128xbf16, #tpu.memory_space<vmem>>, %arg2: memref<392x128xbf16, #tpu.memory_space<vmem>>, %arg3: memref<16x128xf32, #tpu.memory_space<vmem>>, %arg4: memref<8x64xbf16, #tpu.memory_space<vmem>>, %arg5: memref<1x4x128xf32, #tpu.memory_space<vmem>>) attributes {dimension_semantics = [#tpu.dimension_semantics<parallel>], iteration_bounds = array<i64: 1>, scalar_prefetch = 0 : i64, scratch_operands = 0 : i64, tpu.core_type = #tpu.core_type<tc>, window_params = [{transform_indices = @transform_0, window_bounds = array<i64: 64, 128>}, {pipeline_mode = #tpu.pipeline_mode<synchronous>, transform_indices = @transform_1, window_bounds = array<i64: 392, 128>}, {pipeline_mode = #tpu.pipeline_mode<synchronous>, transform_indices = @transform_2, window_bounds = array<i64: 16, 128>}, {transform_indices = @transform_3, window_bounds = array<i64: 8, 64>}, {transform_indices = @transform_4, window_bounds = array<i64: 1, 4, 128>}]} {
    %c0 = arith.constant 0 : index
    %c0_0 = arith.constant 0 : index
    %0 = vector.load %arg1[%c0, %c0_0] : memref<64x128xbf16, #tpu.memory_space<vmem>>, vector<64x128xbf16>
    %c0_1 = arith.constant 0 : index
    %c0_2 = arith.constant 0 : index
    %1 = vector.load %arg2[%c0_1, %c0_2] : memref<392x128xbf16, #tpu.memory_space<vmem>>, vector<128x128xbf16>
    %c128 = arith.constant 128 : index
    %c0_3 = arith.constant 0 : index
    %2 = vector.load %arg2[%c128, %c0_3] : memref<392x128xbf16, #tpu.memory_space<vmem>>, vector<128x128xbf16>
    %c256 = arith.constant 256 : index
    %c0_4 = arith.constant 0 : index
    %3 = vector.load %arg2[%c256, %c0_4] : memref<392x128xbf16, #tpu.memory_space<vmem>>, vector<128x128xbf16>
    %c384 = arith.constant 384 : index
    %c0_5 = arith.constant 0 : index
    %4 = vector.load %arg2[%c384, %c0_5] : memref<392x128xbf16, #tpu.memory_space<vmem>>, vector<8x128xbf16>
    %cst = arith.constant dense<0.000000e+00> : vector<64x128xf32>
    %5 = tpu.matmul %0, %1, %cst {dimension_numbers = #tpu.dot_dimension_numbers<[1], [0], [0], [1], [0, 0, 1, 1], [], []>} : vector<64x128xbf16>, vector<128x128xbf16>, vector<64x128xf32> -> vector<64x128xf32>
    %c0_6 = arith.constant 0 : index
    %c0_7 = arith.constant 0 : index
    %6 = vector.load %arg3[%c0_6, %c0_7] : memref<16x128xf32, #tpu.memory_space<vmem>>, vector<1x128xf32>
    %7 = vector.broadcast %6 : vector<1x128xf32> to vector<64x128xf32>
    %8 = arith.addf %5, %7 : vector<64x128xf32>
    %cst_8 = arith.constant 0.000000e+00 : f32
    %9 = vector.broadcast %cst_8 : f32 to vector<64x128xf32>
    %10 = arith.maximumf %8, %9 : vector<64x128xf32>
    %11 = arith.truncf %10 : vector<64x128xf32> to vector<64x128xbf16>
    %cst_9 = arith.constant dense<0.000000e+00> : vector<64x128xf32>
    %12 = tpu.matmul %11, %2, %cst_9 {dimension_numbers = #tpu.dot_dimension_numbers<[1], [0], [0], [1], [0, 0, 1, 1], [], []>} : vector<64x128xbf16>, vector<128x128xbf16>, vector<64x128xf32> -> vector<64x128xf32>
    %c1 = arith.constant 1 : index
    %c0_10 = arith.constant 0 : index
    %13 = vector.load %arg3[%c1, %c0_10] : memref<16x128xf32, #tpu.memory_space<vmem>>, vector<1x128xf32>
    %14 = vector.broadcast %13 : vector<1x128xf32> to vector<64x128xf32>
    %15 = arith.addf %12, %14 : vector<64x128xf32>
    %cst_11 = arith.constant 0.000000e+00 : f32
    %16 = vector.broadcast %cst_11 : f32 to vector<64x128xf32>
    %17 = arith.maximumf %15, %16 : vector<64x128xf32>
    %18 = arith.truncf %17 : vector<64x128xf32> to vector<64x128xbf16>
    "tpu.trace_start"() <{level = 10 : i32, message = "rd,md->rm"}> : () -> ()
    %cst_12 = arith.constant dense<0.000000e+00> : vector<8x64xf32>
    %19 = tpu.matmul %4, %18, %cst_12 {dimension_numbers = #tpu.dot_dimension_numbers<[1], [1], [0], [0], [0, 0, 1, 0], [], []>} : vector<8x128xbf16>, vector<64x128xbf16>, vector<8x64xf32> -> vector<8x64xf32>
    "tpu.trace_stop"() : () -> ()
    %c8 = arith.constant 8 : index
    %c0_13 = arith.constant 0 : index
    %20 = vector.load %arg3[%c8, %c0_13] : memref<16x128xf32, #tpu.memory_space<vmem>>, vector<8x1xf32>
    %21 = vector.broadcast %20 : vector<8x1xf32> to vector<8x64xf32>
    %22 = arith.addf %19, %21 : vector<8x64xf32>
    %23 = arith.truncf %22 : vector<8x64xf32> to vector<8x64xbf16>
    %c0_14 = arith.constant 0 : index
    %c0_15 = arith.constant 0 : index
    %24 = vector.load %arg4[%c0_14, %c0_15] : memref<8x64xbf16, #tpu.memory_space<vmem>>, vector<8x64xbf16>
    tpu.vector_store %arg4[%c0_14, %c0_15], %23 {strides = array<i32>} : memref<8x64xbf16, #tpu.memory_space<vmem>>, vector<8x64xbf16>,
    %25 = vector.extract_strided_slice %17 {offsets = [0, 0], sizes = [16, 128], strides = [1, 1]} : vector<64x128xf32> to vector<16x128xf32>
    %cst_16 = arith.constant dense<0.000000e+00> : vector<128xf32>
    %26 = vector.multi_reduction <add>, %25, %cst_16 [0] : vector<16x128xf32> to vector<128xf32>
    %27 = vector.shape_cast %26 : vector<128xf32> to vector<1x128xf32>
    %28 = vector.extract_strided_slice %17 {offsets = [16, 0], sizes = [16, 128], strides = [1, 1]} : vector<64x128xf32> to vector<16x128xf32>
    %cst_17 = arith.constant dense<0.000000e+00> : vector<128xf32>
    %29 = vector.multi_reduction <add>, %28, %cst_17 [0] : vector<16x128xf32> to vector<128xf32>
    %30 = vector.shape_cast %29 : vector<128xf32> to vector<1x128xf32>
    %31 = vector.extract_strided_slice %17 {offsets = [32, 0], sizes = [16, 128], strides = [1, 1]} : vector<64x128xf32> to vector<16x128xf32>
    %cst_18 = arith.constant dense<0.000000e+00> : vector<128xf32>
    %32 = vector.multi_reduction <add>, %31, %cst_18 [0] : vector<16x128xf32> to vector<128xf32>
    %33 = vector.shape_cast %32 : vector<128xf32> to vector<1x128xf32>
    %34 = vector.extract_strided_slice %17 {offsets = [48, 0], sizes = [16, 128], strides = [1, 1]} : vector<64x128xf32> to vector<16x128xf32>
    %cst_19 = arith.constant dense<0.000000e+00> : vector<128xf32>
    %35 = vector.multi_reduction <add>, %34, %cst_19 [0] : vector<16x128xf32> to vector<128xf32>
    %36 = vector.shape_cast %35 : vector<128xf32> to vector<1x128xf32>
    %37 = tpu.concatenate %27, %30, %33, %36 in 0 : vector<1x128xf32>, vector<1x128xf32>, vector<1x128xf32>, vector<1x128xf32> -> vector<4x128xf32>
    %cst_20 = arith.constant 6.250000e-02 : f32
    %38 = vector.broadcast %cst_20 : f32 to vector<4x128xf32>
    %39 = arith.mulf %37, %38 : vector<4x128xf32>
    %40 = arith.truncf %39 : vector<4x128xf32> to vector<4x128xbf16>
    %cst_21 = arith.constant dense<0.000000e+00> : vector<4x128xf32>
    %41 = tpu.matmul %40, %3, %cst_21 {dimension_numbers = #tpu.dot_dimension_numbers<[1], [0], [0], [1], [0, 0, 1, 1], [], []>} : vector<4x128xbf16>, vector<128x128xbf16>, vector<4x128xf32> -> vector<4x128xf32>
    %c2 = arith.constant 2 : index
    %c0_22 = arith.constant 0 : index
    %42 = vector.load %arg3[%c2, %c0_22] : memref<16x128xf32, #tpu.memory_space<vmem>>, vector<1x128xf32>
    %43 = vector.broadcast %42 : vector<1x128xf32> to vector<4x128xf32>
    %44 = arith.addf %41, %43 : vector<4x128xf32>
    %45 = vector.shape_cast %44 : vector<4x128xf32> to vector<1x4x128xf32>
    %c0_23 = arith.constant 0 : index
    %c0_24 = arith.constant 0 : index
    %c0_25 = arith.constant 0 : index
    %46 = vector.load %arg5[%c0_23, %c0_24, %c0_25] : memref<1x4x128xf32, #tpu.memory_space<vmem>>, vector<1x4x128xf32>
    tpu.vector_store %arg5[%c0_23, %c0_24, %c0_25], %45 {strides = array<i32>} : memref<1x4x128xf32, #tpu.memory_space<vmem>>, vector<1x4x128xf32>,
    return
  }
  func.func @transform_0(%arg0: i32) -> (i32, i32) {
    %c0_i32 = arith.constant 0 : i32
    %c0_i32_0 = arith.constant 0 : i32
    return %arg0, %c0_i32 : i32, i32
  }
  func.func @transform_1(%arg0: i32) -> (i32, i32) {
    %c0_i32 = arith.constant 0 : i32
    %c0_i32_0 = arith.constant 0 : i32
    %c0_i32_1 = arith.constant 0 : i32
    return %c0_i32, %c0_i32_0 : i32, i32
  }
  func.func @transform_2(%arg0: i32) -> (i32, i32) {
    %c0_i32 = arith.constant 0 : i32
    %c0_i32_0 = arith.constant 0 : i32
    %c0_i32_1 = arith.constant 0 : i32
    return %c0_i32, %c0_i32_0 : i32, i32
  }
  func.func @transform_3(%arg0: i32) -> (i32, i32) {
    %c0_i32 = arith.constant 0 : i32
    %c0_i32_0 = arith.constant 0 : i32
    return %c0_i32, %arg0 : i32, i32
  }
  func.func @transform_4(%arg0: i32) -> (i32, i32, i32) {
    %c0_i32 = arith.constant 0 : i32
    %c0_i32_0 = arith.constant 0 : i32
    %c0_i32_1 = arith.constant 0 : i32
    return %arg0, %c0_i32, %c0_i32_0 : i32, i32, i32
  }
}

</mosaic_0001>

<llo_original>
// kernel: forward.1
$region0: #{forward.1}
  #allocation0 [shape = 'u32[]', space=smem, size = 0x4, offset = 0x4, fixed_abs, tag = 'smem constant byte address 0x4 - core index']
  #allocation1 [shape = 'u32[144,128]{1,0:T(1,128)}', space=vmem, size = 0x12000, scoped, tag = 'internal scratch']
  %s0 = inlined_call_operand.vmem [shape: bf16[64,128], index: 0, kind: input, shape index: {}]
  %s1 = inlined_call_operand.vmem [shape: bf16[392,128], index: 1, kind: input, shape index: {}]
  %s2 = inlined_call_operand.vmem [shape: f32[16,128], index: 2, kind: input, shape index: {}]
  %s3 = inlined_call_operand.vmem [shape: bf16[8,64], index: 3, kind: output, shape index: {0}]
  %s4 = inlined_call_operand.vmem [shape: f32[1,4,128], index: 4, kind: output, shape index: {1}]
  %5 = xla_tuple %s3, %s4
  %s6 = sld [smem:[#allocation0]]
  $region30: #{forward.1} parent=0
    _
  %s8 = ssub.s32 1, %s6
  %s9 = scalar_select 0, %s8, %s6
  // Predicated region
  $region2: #{forward.1} parent=0 // pred_check
    _
  $region3: #{forward.1} parent=0 // pred_check_branch
    %11 = sbr.rel (0) target = $region5
  $region4: #{forward.1} parent=0 // pred_region
    _
  $region5: #{forward.1} parent=0 // pred_fallthru
    _
  // Predicated region
  $region6: #{forward.1} parent=0 // pred_check
    _
  $region7: #{forward.1} parent=0 // pred_check_branch
    %13 = sbr.rel (0) target = $region9
  $region8: #{forward.1} parent=0 // pred_region
    _
  $region9: #{forward.1} parent=0 // pred_fallthru
    _
  // Predicated region
  $region10: #{forward.1} parent=0 // pred_check
    _
  $region11: #{forward.1} parent=0 // pred_check_branch
    %15 = sbr.rel (0) target = $region13
  $region12: #{forward.1} parent=0 // pred_region
    _
  $region13: #{forward.1} parent=0 // pred_fallthru
    _
  %v17 = vld [vmem:[%s0] sm:$0xf]
  %v18 = vld [vmem:[%s0 + $0x4] sm:$0xf]
  %v19 = vld [vmem:[%s0 + $0x8] sm:$0xf]
  %v20 = vld [vmem:[%s0 + $0xc] sm:$0xf]
  %v21 = vld [vmem:[%s0 + $0x10] sm:$0xf]
  %v22 = vld [vmem:[%s0 + $0x14] sm:$0xf]
  %v23 = vld [vmem:[%s0 + $0x18] sm:$0xf]
  %v24 = vld [vmem:[%s0 + $0x1c] sm:$0xf]
  %v25 = vld [vmem:[%s1] sm:$0xf]
  %v26 = vld [vmem:[%s1 + $0x4] sm:$0xf]
  %v27 = vld [vmem:[%s1 + $0x8] sm:$0xf]
  %v28 = vld [vmem:[%s1 + $0xc] sm:$0xf]
  %v29 = vld [vmem:[%s1 + $0x10] sm:$0xf]
  %v30 = vld [vmem:[%s1 + $0x14] sm:$0xf]
  %v31 = vld [vmem:[%s1 + $0x18] sm:$0xf]
  %v32 = vld [vmem:[%s1 + $0x1c] sm:$0xf]
  %v33 = vld [vmem:[%s1 + $0x20] sm:$0xf]
  %v34 = vld [vmem:[%s1 + $0x24] sm:$0xf]
  %v35 = vld [vmem:[%s1 + $0x28] sm:$0xf]
  %v36 = vld [vmem:[%s1 + $0x2c] sm:$0xf]
  %v37 = vld [vmem:[%s1 + $0x30] sm:$0xf]
  %v38 = vld [vmem:[%s1 + $0x34] sm:$0xf]
  %v39 = vld [vmem:[%s1 + $0x38] sm:$0xf]
  %v40 = vld [vmem:[%s1 + $0x3c] sm:$0xf]
  %v41 = vld [vmem:[%s1 + $0x40] sm:$0xf]
  %v42 = vld [vmem:[%s1 + $0x44] sm:$0xf]
  %v43 = vld [vmem:[%s1 + $0x48] sm:$0xf]
  %v44 = vld [vmem:[%s1 + $0x4c] sm:$0xf]
  %v45 = vld [vmem:[%s1 + $0x50] sm:$0xf]
  %v46 = vld [vmem:[%s1 + $0x54] sm:$0xf]
  %v47 = vld [vmem:[%s1 + $0x58] sm:$0xf]
  %v48 = vld [vmem:[%s1 + $0x5c] sm:$0xf]
  %v49 = vld [vmem:[%s1 + $0x60] sm:$0xf]
  %v50 = vld [vmem:[%s1 + $0x64] sm:$0xf]
  %v51 = vld [vmem:[%s1 + $0x68] sm:$0xf]
  %v52 = vld [vmem:[%s1 + $0x6c] sm:$0xf]
  %v53 = vld [vmem:[%s1 + $0x70] sm:$0xf]
  %v54 = vld [vmem:[%s1 + $0x74] sm:$0xf]
  %v55 = vld [vmem:[%s1 + $0x78] sm:$0xf]
  %v56 = vld [vmem:[%s1 + $0x7c] sm:$0xf]
  %v57 = vld [vmem:[%s1 + $0x80] sm:$0xf]
  %v58 = vld [vmem:[%s1 + $0x84] sm:$0xf]
  %v59 = vld [vmem:[%s1 + $0x88] sm:$0xf]
  %v60 = vld [vmem:[%s1 + $0x8c] sm:$0xf]
  %v61 = vld [vmem:[%s1 + $0x90] sm:$0xf]
  %v62 = vld [vmem:[%s1 + $0x94] sm:$0xf]
  %v63 = vld [vmem:[%s1 + $0x98] sm:$0xf]
  %v64 = vld [vmem:[%s1 + $0x9c] sm:$0xf]
  %v65 = vld [vmem:[%s1 + $0xa0] sm:$0xf]
  %v66 = vld [vmem:[%s1 + $0xa4] sm:$0xf]
  %v67 = vld [vmem:[%s1 + $0xa8] sm:$0xf]
  %v68 = vld [vmem:[%s1 + $0xac] sm:$0xf]
  %v69 = vld [vmem:[%s1 + $0xb0] sm:$0xf]
  %v70 = vld [vmem:[%s1 + $0xb4] sm:$0xf]
  %v71 = vld [vmem:[%s1 + $0xb8] sm:$0xf]
  %v72 = vld [vmem:[%s1 + $0xbc] sm:$0xf]
  %v73 = vld [vmem:[%s1 + $0xc0] sm:$0xf]
  %v74 = vld [vmem:[%s2] sm:$0x1]
  %v75 = vlaneseq
  %v76 = vshrl.u32 %v75, 7
  %v77 = vsub.s32 0, %v76
  %v78 = vrot.slane %v74, %v77
  %v87 = vunpack.c.l.b16 %v17
  %v88 = vunpack.c.l.b16 %v18
  %v89 = vunpack.c.l.b16 %v19
  %v90 = vunpack.c.l.b16 %v20
  %v91 = vunpack.c.l.b16 %v21
  %v92 = vunpack.c.l.b16 %v22
  %v93 = vunpack.c.l.b16 %v23
  %v94 = vunpack.c.l.b16 %v24
  %v95 = vpack.c.b16 %v88, %v87
  %v96 = vpack.c.b16 %v90, %v89
  %v97 = vpack.c.b16 %v92, %v91
  %v98 = vpack.c.b16 %v94, %v93
  %v119 = vunpack.c.l.b16 %v25
  %v120 = vunpack.c.l.b16 %v26
  %v121 = vunpack.c.l.b16 %v27
  %v122 = vunpack.c.l.b16 %v28
  %v123 = vunpack.c.l.b16 %v29
  %v124 = vunpack.c.l.b16 %v30
  %v125 = vunpack.c.l.b16 %v31
  %v126 = vunpack.c.l.b16 %v32
  %v127 = vunpack.c.l.b16 %v33
  %v128 = vunpack.c.l.b16 %v34
  %v129 = vunpack.c.l.b16 %v35
  %v130 = vunpack.c.l.b16 %v36
  %v131 = vunpack.c.l.b16 %v37
  %v132 = vunpack.c.l.b16 %v38
  %v133 = vunpack.c.l.b16 %v39
  %v134 = vunpack.c.l.b16 %v40
  %v135 = vpack.c.b16 %v120, %v119
  %v136 = vpack.c.b16 %v122, %v121
  %v137 = vpack.c.b16 %v124, %v123
  %v138 = vpack.c.b16 %v126, %v125
  %v139 = vpack.c.b16 %v128, %v127
  %v140 = vpack.c.b16 %v130, %v129
  %v141 = vpack.c.b16 %v132, %v131
  %v142 = vpack.c.b16 %v134, %v133
  %151 = vmatprep.subr.bf16.mxu0 0
  %152 = vmatpush1.bf16.msra.mxu0 %v142
  %153 = vmatprep.subr.bf16.mxu0 0
  %154 = vmatpush1.bf16.msra.mxu0 %v141
  %155 = vmatprep.subr.bf16.mxu0 0
  %156 = vmatpush1.bf16.msra.mxu0 %v140
  %157 = vmatprep.subr.bf16.mxu0 0
  %158 = vmatpush1.bf16.msra.mxu0 %v139
  %159 = vmatprep.subr.bf16.mxu0 0
  %160 = vmatpush1.bf16.msra.mxu0 %v138
  %161 = vmatprep.subr.bf16.mxu0 0
  %162 = vmatpush1.bf16.msra.mxu0 %v137
  %163 = vmatprep.subr.bf16.mxu0 0
  %164 = vmatpush1.bf16.msra.mxu0 %v136
  %165 = vmatprep.subr.bf16.mxu0 0
  %166 = vmatpush1.bf16.msra.mxu0 %v135
  %167 = vmatprep.subr.bf16.mxu0 0
  %168 = vmatpush2.bf16.msra.mxu0 0
  %169 = vmatprep.subr.bf16.mxu0 0
  %170 = vmatpush2.bf16.msra.mxu0 0
  %171 = vmatprep.subr.bf16.mxu0 0
  %172 = vmatpush2.bf16.msra.mxu0 0
  %173 = vmatprep.subr.bf16.mxu0 0
  %174 = vmatpush2.bf16.msra.mxu0 0
  %175 = vmatprep.subr.bf16.mxu0 0
  %176 = vmatpush2.bf16.msra.mxu0 0
  %177 = vmatprep.subr.bf16.mxu0 0
  %178 = vmatpush2.bf16.msra.mxu0 0
  %179 = vmatprep.subr.bf16.mxu0 0
  %180 = vmatpush2.bf16.msra.mxu0 0
  %181 = vmatprep.subr.bf16.mxu0 0
  %182 = vmatpush2.bf16.msra.mxu0 0
  %183 = vmatprep.mubr.bf16.mxu0 0
  %184 = vmatmul.mubr.bf16.gmra.mxu0 %v95
  %v185 = vpop.f32.mrf.mxu0
  %v186 = vadd.f32 %v78, %v185
  %v187 = vpop.f32.mrf.mxu0
  %v188 = vpop.f32.mrf.mxu0
  %v189 = vadd.f32 %v78, %v188
  %v190 = vpop.f32.mrf.mxu0
  %191 = vmatprep.mubr.bf16.mxu0 0
  %192 = vmatmul.mubr.bf16.gmra.mxu0 %v96
  %v193 = vpop.f32.mrf.mxu0
  %v194 = vadd.f32 %v78, %v193
  %v195 = vpop.f32.mrf.mxu0
  %v196 = vpop.f32.mrf.mxu0
  %v197 = vadd.f32 %v78, %v196
  %v198 = vpop.f32.mrf.mxu0
  %199 = vmatprep.mubr.bf16.mxu0 0
  %200 = vmatmul.mubr.bf16.gmra.mxu0 %v97
  %v201 = vpop.f32.mrf.mxu0
  %v202 = vadd.f32 %v78, %v201
  %v203 = vpop.f32.mrf.mxu0
  %v204 = vpop.f32.mrf.mxu0
  %v205 = vadd.f32 %v78, %v204
  %v206 = vpop.f32.mrf.mxu0
  %207 = vmatprep.mubr.bf16.mxu0 0
  %208 = vmatmul.mubr.bf16.gmra.mxu0 %v98
  %v209 = vpop.f32.mrf.mxu0
  %v210 = vadd.f32 %v78, %v209
  %v211 = vpop.f32.mrf.mxu0
  %v212 = vpop.f32.mrf.mxu0
  %v213 = vadd.f32 %v78, %v212
  %v214 = vpop.f32.mrf.mxu0
  %215 = vdwg.mxu0
  %v216 = vmax.f32 %v186, 0.0
  %v217 = vmax.f32 %v189, 0.0
  %v218 = vmax.f32 %v194, 0.0
  %v219 = vmax.f32 %v197, 0.0
  %v220 = vmax.f32 %v202, 0.0
  %v221 = vmax.f32 %v205, 0.0
  %v222 = vmax.f32 %v210, 0.0
  %v223 = vmax.f32 %v213, 0.0
  %v224 = vpack.c.bf16 %v217, %v216
  %v225 = vpack.c.bf16 %v219, %v218
  %v226 = vpack.c.bf16 %v221, %v220
  %v227 = vpack.c.bf16 %v223, %v222
  %v228 = vld [vmem:[%s2 + $0x1] sm:$0x1]
  %v229 = vlaneseq
  %v230 = vshrl.u32 %v229, 7
  %v231 = vsub.s32 0, %v230
  %v232 = vrot.slane %v228, %v231
  %v249 = vunpack.c.l.b16 %v41
  %v250 = vunpack.c.l.b16 %v42
  %v251 = vunpack.c.l.b16 %v43
  %v252 = vunpack.c.l.b16 %v44
  %v253 = vunpack.c.l.b16 %v45
  %v254 = vunpack.c.l.b16 %v46
  %v255 = vunpack.c.l.b16 %v47
  %v256 = vunpack.c.l.b16 %v48
  %v257 = vunpack.c.l.b16 %v49
  %v258 = vunpack.c.l.b16 %v50
  %v259 = vunpack.c.l.b16 %v51
  %v260 = vunpack.c.l.b16 %v52
  %v261 = vunpack.c.l.b16 %v53
  %v262 = vunpack.c.l.b16 %v54
  %v263 = vunpack.c.l.b16 %v55
  %v264 = vunpack.c.l.b16 %v56
  %v265 = vpack.c.b16 %v250, %v249
  %v266 = vpack.c.b16 %v252, %v251
  %v267 = vpack.c.b16 %v254, %v253
  %v268 = vpack.c.b16 %v256, %v255
  %v269 = vpack.c.b16 %v258, %v257
  %v270 = vpack.c.b16 %v260, %v259
  %v271 = vpack.c.b16 %v262, %v261
  %v272 = vpack.c.b16 %v264, %v263
  %281 = vmatprep.subr.bf16.mxu0 0
  %282 = vmatpush1.bf16.msra.mxu0 %v272
  %283 = vmatprep.subr.bf16.mxu0 0
  %284 = vmatpush1.bf16.msra.mxu0 %v271
  %285 = vmatprep.subr.bf16.mxu0 0
  %286 = vmatpush1.bf16.msra.mxu0 %v270
  %287 = vmatprep.subr.bf16.mxu0 0
  %288 = vmatpush1.bf16.msra.mxu0 %v269
  %289 = vmatprep.subr.bf16.mxu0 0
  %290 = vmatpush1.bf16.msra.mxu0 %v268
  %291 = vmatprep.subr.bf16.mxu0 0
  %292 = vmatpush1.bf16.msra.mxu0 %v267
  %293 = vmatprep.subr.bf16.mxu0 0
  %294 = vmatpush1.bf16.msra.mxu0 %v266
  %295 = vmatprep.subr.bf16.mxu0 0
  %296 = vmatpush1.bf16.msra.mxu0 %v265
  %297 = vmatprep.subr.bf16.mxu0 0
  %298 = vmatpush2.bf16.msra.mxu0 0
  %299 = vmatprep.subr.bf16.mxu0 0
  %300 = vmatpush2.bf16.msra.mxu0 0
  %301 = vmatprep.subr.bf16.mxu0 0
  %302 = vmatpush2.bf16.msra.mxu0 0
  %303 = vmatprep.subr.bf16.mxu0 0
  %304 = vmatpush2.bf16.msra.mxu0 0
  %305 = vmatprep.subr.bf16.mxu0 0
  %306 = vmatpush2.bf16.msra.mxu0 0
  %307 = vmatprep.subr.bf16.mxu0 0
  %308 = vmatpush2.bf16.msra.mxu0 0
  %309 = vmatprep.subr.bf16.mxu0 0
  %310 = vmatpush2.bf16.msra.mxu0 0
  %311 = vmatprep.subr.bf16.mxu0 0
  %312 = vmatpush2.bf16.msra.mxu0 0
  %313 = vmatprep.mubr.bf16.mxu0 0
  %314 = vmatmul.mubr.bf16.gmra.mxu0 %v224
  %v315 = vpop.f32.mrf.mxu0
  %v316 = vadd.f32 %v232, %v315
  %v317 = vpop.f32.mrf.mxu0
  %v318 = vpop.f32.mrf.mxu0
  %v319 = vadd.f32 %v232, %v318
  %v320 = vpop.f32.mrf.mxu0
  %321 = vmatprep.mubr.bf16.mxu0 0
  %322 = vmatmul.mubr.bf16.gmra.mxu0 %v225
  %v323 = vpop.f32.mrf.mxu0
  %v324 = vadd.f32 %v232, %v323
  %v325 = vpop.f32.mrf.mxu0
  %v326 = vpop.f32.mrf.mxu0
  %v327 = vadd.f32 %v232, %v326
  %v328 = vpop.f32.mrf.mxu0
  %329 = vmatprep.mubr.bf16.mxu0 0
  %330 = vmatmul.mubr.bf16.gmra.mxu0 %v226
  %v331 = vpop.f32.mrf.mxu0
  %v332 = vadd.f32 %v232, %v331
  %v333 = vpop.f32.mrf.mxu0
  %v334 = vpop.f32.mrf.mxu0
  %v335 = vadd.f32 %v232, %v334
  %v336 = vpop.f32.mrf.mxu0
  %337 = vmatprep.mubr.bf16.mxu0 0
  %338 = vmatmul.mubr.bf16.gmra.mxu0 %v227
  %v339 = vpop.f32.mrf.mxu0
  %v340 = vadd.f32 %v232, %v339
  %v341 = vpop.f32.mrf.mxu0
  %v342 = vpop.f32.mrf.mxu0
  %v343 = vadd.f32 %v232, %v342
  %v344 = vpop.f32.mrf.mxu0
  %345 = vdwg.mxu0
  %v346 = vmax.f32 %v316, 0.0
  %v347 = vmax.f32 %v319, 0.0
  %v348 = vmax.f32 %v324, 0.0
  %v349 = vmax.f32 %v327, 0.0
  %v350 = vmax.f32 %v332, 0.0
  %v351 = vmax.f32 %v335, 0.0
  %v352 = vmax.f32 %v340, 0.0
  %v353 = vmax.f32 %v343, 0.0
  %v354 = vpack.c.bf16 %v347, %v346
  %v355 = vpack.c.bf16 %v349, %v348
  %v356 = vpack.c.bf16 %v351, %v350
  %v357 = vpack.c.bf16 %v353, %v352
  %v358 = vld [vmem:[%s2 + $0x8] sm:$0xff]
  %360 = vset.pattern.permute.xlu0 0
  %361 = vperm.xlu0 %360, %v358
  %v362 = vpop.permute.xlu0 %361
  %364 = vmatprep.subr.bf16.mxu0 0
  %365 = vmatpush1.bf16.xpose.msra.mxu0 0
  %366 = vmatprep.subr.bf16.mxu0 0
  %367 = vmatpush1.bf16.xpose.msra.mxu0 0
  %368 = vmatprep.subr.bf16.mxu0 0
  %369 = vmatpush1.bf16.xpose.msra.mxu0 0
  %370 = vmatprep.subr.bf16.mxu0 0
  %371 = vmatpush1.bf16.xpose.msra.mxu0 0
  %372 = vmatprep.subr.bf16.mxu0 0
  %373 = vmatpush1.bf16.xpose.msra.mxu0 %v357
  %374 = vmatprep.subr.bf16.mxu0 0
  %375 = vmatpush1.bf16.xpose.msra.mxu0 %v356
  %376 = vmatprep.subr.bf16.mxu0 0
  %377 = vmatpush1.bf16.xpose.msra.mxu0 %v355
  %378 = vmatprep.subr.bf16.mxu0 0
  %379 = vmatpush1.bf16.xpose.msra.mxu0 %v354
  %380 = vmatprep.subr.bf16.mxu0 0
  %381 = vmatpush2.bf16.xpose.msra.mxu0 0
  %382 = vmatprep.subr.bf16.mxu0 0
  %383 = vmatpush2.bf16.xpose.msra.mxu0 0
  %384 = vmatprep.subr.bf16.mxu0 0
  %385 = vmatpush2.bf16.xpose.msra.mxu0 0
  %386 = vmatprep.subr.bf16.mxu0 0
  %387 = vmatpush2.bf16.xpose.msra.mxu0 0
  %388 = vmatprep.subr.bf16.mxu0 0
  %389 = vmatpush2.bf16.xpose.msra.mxu0 0
  %390 = vmatprep.subr.bf16.mxu0 0
  %391 = vmatpush2.bf16.xpose.msra.mxu0 0
  %392 = vmatprep.subr.bf16.mxu0 0
  %393 = vmatpush2.bf16.xpose.msra.mxu0 0
  %394 = vmatprep.subr.bf16.mxu0 0
  %395 = vmatpush2.bf16.xpose.msra.mxu0 0
  %396 = vmatprep.mubr.bf16.mxu0 0
  %397 = vmatmul.mubr.bf16.gmra.mxu0 %v73
  %v398 = vpop.f32.mrf.mxu0
  %v399 = vadd.f32 %v362, %v398
  %v400 = vpop.f32.mrf.mxu0
  %v401 = vpop.f32.mrf.mxu0
  %v402 = vpop.f32.mrf.mxu0
  %403 = vdwg.mxu0
  %v404 = vpack.c.bf16 %v399, %v399
  %vm405 = vcmask 519168
  %406 = vst.msk [vmem:[%s3] sm:$0xf] %vm405, %v404
  %v407 = vadd.f32 %v346, %v347
  %v408 = vrot.slane %v407, 4
  %v409 = vadd.f32 %v407, %v408
  %v410 = vrot.slane %v409, 2
  %v411 = vadd.f32 %v409, %v410
  %v412 = vrot.slane %v411, 1
  %v413 = vadd.f32 %v411, %v412
  %v414 = vadd.f32 %v348, %v349
  %v415 = vrot.slane %v414, 4
  %v416 = vadd.f32 %v414, %v415
  %v417 = vrot.slane %v416, 2
  %v418 = vadd.f32 %v416, %v417
  %v419 = vrot.slane %v418, 1
  %v420 = vadd.f32 %v418, %v419
  %v421 = vadd.f32 %v350, %v351
  %v422 = vrot.slane %v421, 4
  %v423 = vadd.f32 %v421, %v422
  %v424 = vrot.slane %v423, 2
  %v425 = vadd.f32 %v423, %v424
  %v426 = vrot.slane %v425, 1
  %v427 = vadd.f32 %v425, %v426
  %v428 = vadd.f32 %v352, %v353
  %v429 = vrot.slane %v428, 4
  %v430 = vadd.f32 %v428, %v429
  %v431 = vrot.slane %v430, 2
  %v432 = vadd.f32 %v430, %v431
  %v433 = vrot.slane %v432, 1
  %v434 = vadd.f32 %v432, %v433
  %vm435 = vcmask 1040384
  %v436 = vsel %vm435, %v413, %v420
  %vm437 = vcmask 1041408
  %v438 = vsel %vm437, %v436, %v427
  %vm439 = vcmask 1042432
  %v440 = vsel %vm439, %v438, %v434
  %v441 = vmul.f32 %v440, 0.0625
  %v442 = vpack.c.bf16 %v441, %v441
  %v443 = vld [vmem:[%s2 + $0x2] sm:$0x1]
  %v444 = vlaneseq
  %v445 = vshrl.u32 %v444, 7
  %v446 = vsub.s32 0, %v445
  %v447 = vrot.slane %v443, %v446
  %v464 = vunpack.c.l.b16 %v57
  %v465 = vunpack.c.l.b16 %v58
  %v466 = vunpack.c.l.b16 %v59
  %v467 = vunpack.c.l.b16 %v60
  %v468 = vunpack.c.l.b16 %v61
  %v469 = vunpack.c.l.b16 %v62
  %v470 = vunpack.c.l.b16 %v63
  %v471 = vunpack.c.l.b16 %v64
  %v472 = vunpack.c.l.b16 %v65
  %v473 = vunpack.c.l.b16 %v66
  %v474 = vunpack.c.l.b16 %v67
  %v475 = vunpack.c.l.b16 %v68
  %v476 = vunpack.c.l.b16 %v69
  %v477 = vunpack.c.l.b16 %v70
  %v478 = vunpack.c.l.b16 %v71
  %v479 = vunpack.c.l.b16 %v72
  %v480 = vpack.c.b16 %v465, %v464
  %v481 = vpack.c.b16 %v467, %v466
  %v482 = vpack.c.b16 %v469, %v468
  %v483 = vpack.c.b16 %v471, %v470
  %v484 = vpack.c.b16 %v473, %v472
  %v485 = vpack.c.b16 %v475, %v474
  %v486 = vpack.c.b16 %v477, %v476
  %v487 = vpack.c.b16 %v479, %v478
  %496 = vmatprep.subr.bf16.mxu0 0
  %497 = vmatpush1.bf16.msra.mxu0 %v487
  %498 = vmatprep.subr.bf16.mxu0 0
  %499 = vmatpush1.bf16.msra.mxu0 %v486
  %500 = vmatprep.subr.bf16.mxu0 0
  %501 = vmatpush1.bf16.msra.mxu0 %v485
  %502 = vmatprep.subr.bf16.mxu0 0
  %503 = vmatpush1.bf16.msra.mxu0 %v484
  %504 = vmatprep.subr.bf16.mxu0 0
  %505 = vmatpush1.bf16.msra.mxu0 %v483
  %506 = vmatprep.subr.bf16.mxu0 0
  %507 = vmatpush1.bf16.msra.mxu0 %v482
  %508 = vmatprep.subr.bf16.mxu0 0
  %509 = vmatpush1.bf16.msra.mxu0 %v481
  %510 = vmatprep.subr.bf16.mxu0 0
  %511 = vmatpush1.bf16.msra.mxu0 %v480
  %512 = vmatprep.subr.bf16.mxu0 0
  %513 = vmatpush2.bf16.msra.mxu0 0
  %514 = vmatprep.subr.bf16.mxu0 0
  %515 = vmatpush2.bf16.msra.mxu0 0
  %516 = vmatprep.subr.bf16.mxu0 0
  %517 = vmatpush2.bf16.msra.mxu0 0
  %518 = vmatprep.subr.bf16.mxu0 0
  %519 = vmatpush2.bf16.msra.mxu0 0
  %520 = vmatprep.subr.bf16.mxu0 0
  %521 = vmatpush2.bf16.msra.mxu0 0
  %522 = vmatprep.subr.bf16.mxu0 0
  %523 = vmatpush2.bf16.msra.mxu0 0
  %524 = vmatprep.subr.bf16.mxu0 0
  %525 = vmatpush2.bf16.msra.mxu0 0
  %526 = vmatprep.subr.bf16.mxu0 0
  %527 = vmatpush2.bf16.msra.mxu0 0
  %528 = vmatprep.mubr.bf16.mxu0 0
  %529 = vmatmul.mubr.bf16.gmra.mxu0 %v442
  %v530 = vpop.f32.mrf.mxu0
  %v531 = vadd.f32 %v447, %v530
  %v532 = vpop.f32.mrf.mxu0
  %v533 = vpop.f32.mrf.mxu0
  %v534 = vpop.f32.mrf.mxu0
  %535 = vdwg.mxu0
  %536 = vst [vmem:[%s4] sm:$0xf] %v531
  // Predicated region
  $region14: #{forward.1} parent=0 // pred_check
    _
  $region15: #{forward.1} parent=0 // pred_check_branch
    %538 = sbr.rel (0) target = $region17
  $region16: #{forward.1} parent=0 // pred_region
    _
  $region17: #{forward.1} parent=0 // pred_fallthru
    _
  // Predicated region
  $region18: #{forward.1} parent=0 // pred_check
    _
  $region19: #{forward.1} parent=0 // pred_check_branch
    %540 = sbr.rel (0) target = $region21
  $region20: #{forward.1} parent=0 // pred_region
    _
  $region21: #{forward.1} parent=0 // pred_fallthru
    _
  // Predicated region
  $region22: #{forward.1} parent=0 // pred_check
    _
  $region23: #{forward.1} parent=0 // pred_check_branch
    %542 = sbr.rel (0) target = $region25
  $region24: #{forward.1} parent=0 // pred_region
    _
  $region25: #{forward.1} parent=0 // pred_fallthru
    _
  // Predicated region
  $region26: #{forward.1} parent=0 // pred_check
    _
  $region27: #{forward.1} parent=0 // pred_check_branch
    %544 = sbr.rel (0) target = $region29
  $region28: #{forward.1} parent=0 // pred_region
    _
  $region29: #{forward.1} parent=0 // pred_fallthru
    _

// kernel: split.4
$region0: #{split.4}
  #allocation0 [shape = 'u32[2048]{0}', space=vmem, size = 0x2000, scoped, tag = 'scoped memory for split.4']
  #allocation1 [shape = 'u32[2048]{0}', space=vmem, size = 0x2000, scoped, tag = 'scoped memory for split.4']
  #allocation2 [shape = 'u32[2048]{0}', space=vmem, size = 0x2000, scoped, tag = 'scoped memory for split.4']
  #allocation3 [shape = 'u32[2048]{0}', space=vmem, size = 0x2000, scoped, tag = 'scoped memory for split.4']
  #allocation4 [shape = 'u32[2048]{0}', space=vmem, size = 0x2000, scoped, tag = 'scoped memory for split.4']
  #allocation5 [shape = 's32[1]{0}', space=sflag, size = 0x4, scoped, tag = 'scoped memory for split.4']
  %s0 = inlined_call_operand.vmem [shape: f32[4,1,4,3], index: 0, kind: input, shape index: {}]
  %s1 = inlined_call_operand.vmem [shape: f32[2,1,4,3], index: 1, kind: output, shape index: {}]
  %v2 = vld [vmem:[%s0] sm:$0xf]
  %vm3 = vcmask 1041408
  %v4 = vsel %vm3, 0, %v2
  %v5 = vrot.slane %v4, 2
  %6 = vst [vmem:[%s1] sm:$0x3] %v5
  %s7 = scalar_lea.vmem %s0, 4
  %v8 = vld [vmem:[%s7] sm:$0xf]
  %vm9 = vcmask 1041408
  %v10 = vsel %vm9, 0, %v8
  %v11 = vrot.slane %v10, 2
  %s12 = scalar_lea.vmem %s1, 2
  %13 = vst [vmem:[%s12] sm:$0x3] %v11
  %s14 = scalar_lea.vmem %s0, 8
  %v15 = vld [vmem:[%s14] sm:$0xf]
  %vm16 = vcmask 1041408
  %v17 = vsel %vm16, 0, %v15
  %v18 = vrot.slane %v17, 2
  %s19 = scalar_lea.vmem %s1, 4
  %20 = vst [vmem:[%s19] sm:$0x3] %v18

</llo_original>
